<compile_context>
chip_gen: v6e
topology: v6e:2x2x1
jax: 0.10.0
libtpu: 0.0.40
codegen_flags: <defaults>
</compile_context>

<pallas_src>
import functools

import numpy as np
import jax
import jax.numpy as jnp
from jax.experimental import pallas as pl
from jax.experimental.pallas import tpu as pltpu

# TODO(synk): `σ.y` is an external symbol in the reference code; assumed to be
# the Pauli-Y matrix [[0, -i], [i, 0]].
SIGMA_Y = np.array([[0.0, -1.0j], [1.0j, 0.0]], dtype=np.complex128)


def _round_up(x: int, m: int) -> int:
    return ((x + m - 1) // m) * m


# ---------------------------------------------------------------------------
# Host-side (glue): lattice constants.
# ---------------------------------------------------------------------------
def make_lattice(l: float, alpha: float):
    x = np.array([[1.0], [0.0]], dtype=np.complex128)
    y = np.array([[0.0], [1.0]], dtype=np.complex128)
    a1 = np.sqrt(3) * l * x
    a2 = (np.sqrt(3) * x + 3.0 * y) * l / 2.0
    r1 = (a1 + a2) / 3.0
    r2 = (-2.0 * a1 + a2) / 3.0
    r3 = (a1 - 2.0 * a2) / 3.0
    r1h = r1 / np.linalg.norm(r1)
    r2h = r2 / np.linalg.norm(r2)
    r3h = r3 / np.linalg.norm(r3)
    # torch's `*` on (2,1) x (1,2) broadcasts to the outer product
    r11 = r1h @ r1h.conj().T
    r22 = r2h @ r2h.conj().T
    r33 = r3h @ r3h.conj().T
    z = np.array([[0.0, 1.0], [-1.0, 0.0]], dtype=np.complex128)
    r1_ = z @ r1h
    r2_ = z @ r2h
    r3_ = z @ r3h
    g1 = (1.0 - alpha) * (r1_ @ r1_.conj().T) + r11
    g2 = (1.0 - alpha) * (r2_ @ r2_.conj().T) + r22
    g3 = (1.0 - alpha) * (r3_ @ r3_.conj().T) + r33
    return dict(a1=a1, a2=a2, r11=r11, r22=r22, r33=r33, g1=g1, g2=g2, g3=g3)


def build_kernel_constants(lat, omega0: float, omega_big: float):
    """Fold w0^2, the C-basis of L and inv(M) into one (8,128) affine basis.

    L(k) = w0^2 * (C0 + K1 C1 + conj(K1) C1c + K2 C2 + conj(K2) C2c)
    H(k) = inv(M) @ L(k) = B0 + K1 B1 + conj(K1) B1c + K2 B2 + conj(K2) B2c
    Packed so that  out = [1, ReK1, ReK2, ImK1, ImK2, 0, 0, 0] @ C
    with out = [Hr.flatten() | Hi.flatten()]  (128 lanes).
    """
    r11, r22, r33 = lat["r11"], lat["r22"], lat["r33"]
    S = r11 + r22 + r33
    w0sq = float(omega0) ** 2

    C0 = np.zeros((8, 8), dtype=np.complex128)
    C0[0:2, 0:2] = S
    C0[2:4, 2:4] = S
    C0[0:2, 2:4] = -r11
    C0[2:4, 0:2] = -r11
    C0[0:2, 4:6] = -2.0 * omega_big * SIGMA_Y
    C0[2:4, 6:8] = -2.0 * omega_big * SIGMA_Y
    C0[4:8, 4:8] = np.eye(4)

    C1 = np.zeros((8, 8), dtype=np.complex128)
    C1[2:4, 0:2] = -r22            # coefficient K1
    C1c = np.zeros((8, 8), dtype=np.complex128)
    C1c[0:2, 2:4] = -r22           # coefficient conj(K1)
    C2 = np.zeros((8, 8), dtype=np.complex128)
    C2[2:4, 0:2] = -r33            # coefficient K2
    C2c = np.zeros((8, 8), dtype=np.complex128)
    C2c[0:2, 2:4] = -r33           # coefficient conj(K2)

    # torch.inverse(M): constant 8x8 permutation matrix; invert host-side.
    M = np.block([[np.zeros((4, 4)), np.eye(4)],
                  [np.eye(4), np.zeros((4, 4))]]).astype(np.complex128)
    Minv = np.linalg.inv(M)

    B0 = w0sq * (Minv @ C0)
    B1 = w0sq * (Minv @ C1)
    B1c = w0sq * (Minv @ C1c)
    B2 = w0sq * (Minv @ C2)
    B2c = w0sq * (Minv @ C2c)

    def row(re_mat, im_mat):
        # [Hr contribution (64 lanes) | Hi contribution (64 lanes)]
        return np.concatenate([np.asarray(re_mat).reshape(64),
                               np.asarray(im_mat).reshape(64)])

    C = np.zeros((8, 128), dtype=np.float64)
    C[0] = row(B0.real, B0.imag)                                    # * 1
    C[1] = row((B1 + B1c).real, (B1 + B1c).imag)                    # * Re K1
    C[2] = row((B2 + B2c).real, (B2 + B2c).imag)                    # * Re K2
    C[3] = row(B1c.imag - B1.imag, B1.real - B1c.real)              # * Im K1
    C[4] = row(B2c.imag - B2.imag, B2.real - B2c.real)              # * Im K2
    # rows 5..7 stay zero (MXU K=8 alignment padding)

    A = np.concatenate([lat["a1"], lat["a2"]], axis=1)              # cols [a1 a2]
    return dict(
        C=jnp.asarray(C, jnp.float32),
        # a1/a2 components closed over as Python scalars (VPU phase FMAs)
        arx=tuple(float(v) for v in A.real[0]),
        ary=tuple(float(v) for v in A.real[1]),
        aix=tuple(float(v) for v in A.imag[0]),
        aiy=tuple(float(v) for v in A.imag[1]),
    )


# ---------------------------------------------------------------------------
# Pallas kernel: lane-dense phase factors + one fused MXU matmul.
# ---------------------------------------------------------------------------
def bulk_h_kernel(kp_ref, c_ref, out_ref, feat_ref, *,
                  arx, ary, aix, aiy, k_is_real, tile):
    a1rx, a2rx = arx
    a1ry, a2ry = ary
    a1ix, a2ix = aix
    a1iy, a2iy = aiy
    a_imag_zero = all(v == 0.0 for v in (a1ix, a2ix, a1iy, a2iy))

    krx = kp_ref[0:1, :]                       # (1, TILE) lane-dense rows
    kry = kp_ref[1:2, :]

    # Re(conj(k)^T a_j) = kr.ar + ki.ai
    ph1_r = krx * a1rx + kry * a1ry
    ph2_r = krx * a2rx + kry * a2ry
    if not k_is_real:
        kix = kp_ref[2:3, :]
        kiy = kp_ref[3:4, :]
        if not a_imag_zero:
            ph1_r = ph1_r + kix * a1ix + kiy * a1iy
            ph2_r = ph2_r + kix * a2ix + kiy * a2iy

    re1 = jnp.cos(ph1_r)
    im1 = jnp.sin(ph1_r)
    re2 = jnp.cos(ph2_r)
    im2 = jnp.sin(ph2_r)

    # K_j = exp(i*phase_j) = exp(-Im phase) * (cos(Re) + i sin(Re)).
    # Im(conj(k)^T a_j) = kr.ai - ki.ar ; skip the EUP exp when it is 0.
    if not (k_is_real and a_imag_zero):
        if k_is_real:
            ph1_i = krx * a1ix + kry * a1iy
            ph2_i = krx * a2ix + kry * a2iy
        elif a_imag_zero:
            ph1_i = -(kix * a1rx + kiy * a1ry)
            ph2_i = -(kix * a2rx + kiy * a2ry)
        else:
            ph1_i = krx * a1ix + kry * a1iy - kix * a1rx - kiy * a1ry
            ph2_i = krx * a2ix + kry * a2iy - kix * a2rx - kiy * a2ry
        m1 = jnp.exp(-ph1_i)
        m2 = jnp.exp(-ph2_i)
        re1 = re1 * m1
        im1 = im1 * m1
        re2 = re2 * m2
        im2 = im2 * m2

    # Feature slab (8, TILE): rows [1, ReK1, ReK2, ImK1, ImK2, 0, 0, 0].
    # Written fully every grid step (megacore-safe; cost is negligible).
    feat_ref[0:1, :] = jnp.ones((1, tile), dtype=jnp.float32)
    feat_ref[1:2, :] = re1
    feat_ref[2:3, :] = re2
    feat_ref[3:4, :] = im1
    feat_ref[4:5, :] = im2
    feat_ref[5:8, :] = jnp.zeros((3, tile), dtype=jnp.float32)

    # One fused MXU matmul, contracting the sublane axis of the feature slab:
    #   out(TILE, 128) = feat(8, TILE)^T @ C(8, 128)
    out_ref[...] = jax.lax.dot_general(
        feat_ref[...], c_ref[...],
        dimension_numbers=(((0,), (0,)), ((), ())),
        preferred_element_type=jnp.float32)


def _choose_tile(nk: int, max_tile: int = 8192) -> int:
    """Multiple of 128, <= max_tile, >= 2 grid steps when there is work."""
    max_tile = max(128, (int(max_tile) // 128) * 128)
    if nk <= 128:
        return 128
    g = max(2, -(-nk // max_tile))           # >=2 steps so both v7x TCs engage
    return min(max_tile, _round_up(-(-nk // g), 128))


def bulk_h(k_real, consts, k_imag=None, *, max_tile=8192):
    """Batched BulkH.forward (perturbation=False path).

    k_real (NK, 2) float, optional k_imag (NK, 2) float.
    Returns a packed (NK_pad, 2, 8, 8) float32 slab:
        out[b, 0] = Re H(k_b), out[b, 1] = Im H(k_b)
    Rows b >= NK are padding (bias-only junk) and must be ignored by callers;
    the packed slab is returned directly to avoid a slice/copy epilogue.
    """
    k_real = jnp.asarray(k_real, jnp.float32)
    nk = k_real.shape[0]
    k_is_real = k_imag is None

    # Lane-dense packing: rows [krx, kry] (+ [kix, kiy] for complex k).
    if k_is_real:
        kp = k_real.T                                                 # (2, NK)
    else:
        kp = jnp.concatenate(
            [k_real, jnp.asarray(k_imag, jnp.float32)], axis=1).T     # (4, NK)

    tile = _choose_tile(nk, max_tile)
    nk_pad = _round_up(nk, tile)
    if nk_pad != nk:
        kp = jnp.pad(kp, ((0, 0), (0, nk_pad - nk)))
    krows = kp.shape[0]

    kernel = functools.partial(
        bulk_h_kernel,
        arx=consts["arx"], ary=consts["ary"],
        aix=consts["aix"], aiy=consts["aiy"],
        k_is_real=k_is_real, tile=tile)

    out = pl.pallas_call(
        kernel,
        grid=(nk_pad // tile,),
        in_specs=[
            pl.BlockSpec((krows, tile), lambda i: (0, i)),   # k packed, lane-dense
            pl.BlockSpec((8, 128), lambda i: (0, 0)),        # C (resident constant)
        ],
        out_specs=pl.BlockSpec((tile, 128), lambda i: (i, 0)),
        out_shape=jax.ShapeDtypeStruct((nk_pad, 128), jnp.float32),
        scratch_shapes=[pltpu.VMEM((8, tile), jnp.float32)],
        compiler_params=pltpu.CompilerParams(
            dimension_semantics=("parallel",),               # v7x: 2 TCs split NK
            vmem_limit_bytes=48 * 1024 * 1024),              # headroom on v5e/v6e/v7x
    )(kp, consts["C"])

    # Free (layout-preserving) reshape of the packed slab; no slice epilogue.
    return out.reshape(nk_pad, 2, 8, 8)


# ---------------------------------------------------------------------------
# Pure numpy reference (direct transcription of the torch forward).
# ---------------------------------------------------------------------------
def reference_bulk_h(kvec, lat, omega0, omega_big):
    r11, r22, r33 = lat["r11"], lat["r22"], lat["r33"]
    K1 = np.exp(1j * (kvec.conj().T @ lat["a1"]))[0, 0]
    K2 = np.exp(1j * (kvec.conj().T @ lat["a2"]))[0, 0]
    S = r11 + r22 + r33
    L11 = np.block([[S, -(r11 + np.conj(K1) * r22 + np.conj(K2) * r33)],
                    [-(r11 + K1 * r22 + K2 * r33), S]])
    L12 = np.block([[-2.0 * omega_big * SIGMA_Y, np.zeros((2, 2))],
                    [np.zeros((2, 2)), -2.0 * omega_big * SIGMA_Y]])
    L = omega0 ** 2 * np.block([[L11, L12],
                                [np.zeros((4, 4)), np.eye(4)]])
    M = np.block([[np.zeros((4, 4)), np.eye(4)],
                  [np.eye(4), np.zeros((4, 4))]]).astype(np.complex128)
    return np.linalg.inv(M) @ L


if __name__ == "__main__":
    # TODO(synk): only the default perturbation=False branch of BulkH.forward
    # is implemented here.
    l, alpha, omega0, omega_big = 1.0, 0.5, 1.0, 0.1
    lat = make_lattice(l, alpha)
    consts = build_kernel_constants(lat, omega0, omega_big)

    NK = 8  # batch of k-points (each corresponds to one torch forward call)
    kr_key, ki_key = jax.random.split(jax.random.PRNGKey(0))
    k_real = jax.random.uniform(kr_key, (NK, 2), jnp.float32, -2.0, 2.0)
    k_imag = jax.random.uniform(ki_key, (NK, 2), jnp.float32, -0.5, 0.5)

    # Fast path: physical (real) wavevectors -> no k_imag stream, no exp.
    out1 = bulk_h(k_real, consts)
    # General path: complex wavevectors (exercises the exp(-Im phase) branch).
    out2 = bulk_h(k_real, consts, k_imag=k_imag)
    jax.block_until_ready((out1, out2))

    # Host-side verification against the direct transcription of the torch code.
    kr_np = np.asarray(k_real, np.float64)
    ki_np = np.asarray(k_imag, np.float64)
    o1 = np.asarray(out1, np.float64)[:NK]
    o2 = np.asarray(out2, np.float64)[:NK]
    H1 = o1[:, 0] + 1j * o1[:, 1]
    H2 = o2[:, 0] + 1j * o2[:, 1]
    for b in range(NK):
        kv_real = kr_np[b].reshape(2, 1).astype(np.complex128)
        H_ref = reference_bulk_h(kv_real, lat, omega0, omega_big)
        np.testing.assert_allclose(H1[b], H_ref, rtol=1e-3, atol=1e-3)

        kv_cplx = (kr_np[b] + 1j * ki_np[b]).reshape(2, 1)
        H_ref2 = reference_bulk_h(kv_cplx, lat, omega0, omega_big)
        np.testing.assert_allclose(H2[b], H_ref2, rtol=1e-3, atol=1e-3)

    print("KERNEL_OK")
</pallas_src>

<mosaic_0001>
module attributes {stable_mosaic.version = 11 : i64} {
  func.func @bulk_h_kernel(%arg0: i32, %arg1: memref<2x128xf32, #tpu.memory_space<vmem>>, %arg2: memref<8x128xf32, #tpu.memory_space<vmem>>, %arg3: memref<128x128xf32, #tpu.memory_space<vmem>>, %arg4: memref<8x128xf32, #tpu.memory_space<vmem>>) attributes {dimension_semantics = [#tpu.dimension_semantics<parallel>], iteration_bounds = array<i64: 1>, scalar_prefetch = 0 : i64, scratch_operands = 1 : i64, tpu.core_type = #tpu.core_type<tc>, window_params = [{transform_indices = @transform_0, window_bounds = array<i64: 2, 128>}, {pipeline_mode = #tpu.pipeline_mode<synchronous>, transform_indices = @transform_1, window_bounds = array<i64: 8, 128>}, {transform_indices = @transform_2, window_bounds = array<i64: 128, 128>}]} {
    %c0 = arith.constant 0 : index
    %c0_0 = arith.constant 0 : index
    %0 = vector.load %arg1[%c0, %c0_0] : memref<2x128xf32, #tpu.memory_space<vmem>>, vector<1x128xf32>
    %c1 = arith.constant 1 : index
    %c0_1 = arith.constant 0 : index
    %1 = vector.load %arg1[%c1, %c0_1] : memref<2x128xf32, #tpu.memory_space<vmem>>, vector<1x128xf32>
    %cst = arith.constant 1.73205078 : f32
    %2 = vector.broadcast %cst : f32 to vector<1x128xf32>
    %3 = arith.mulf %0, %2 : vector<1x128xf32>
    %cst_2 = arith.constant 0.000000e+00 : f32
    %4 = vector.broadcast %cst_2 : f32 to vector<1x128xf32>
    %5 = arith.mulf %1, %4 : vector<1x128xf32>
    %6 = arith.addf %3, %5 : vector<1x128xf32>
    %cst_3 = arith.constant 0.866025388 : f32
    %7 = vector.broadcast %cst_3 : f32 to vector<1x128xf32>
    %8 = arith.mulf %0, %7 : vector<1x128xf32>
    %cst_4 = arith.constant 1.500000e+00 : f32
    %9 = vector.broadcast %cst_4 : f32 to vector<1x128xf32>
    %10 = arith.mulf %1, %9 : vector<1x128xf32>
    %11 = arith.addf %8, %10 : vector<1x128xf32>
    %12 = math.cos %6 : vector<1x128xf32>
    %13 = math.sin %6 : vector<1x128xf32>
    %14 = math.cos %11 : vector<1x128xf32>
    %15 = math.sin %11 : vector<1x128xf32>
    %cst_5 = arith.constant 1.000000e+00 : f32
    %16 = vector.broadcast %cst_5 : f32 to vector<1x128xf32>
    %c0_6 = arith.constant 0 : index
    %c0_7 = arith.constant 0 : index
    %17 = vector.load %arg4[%c0_6, %c0_7] : memref<8x128xf32, #tpu.memory_space<vmem>>, vector<1x128xf32>
    tpu.vector_store %arg4[%c0_6, %c0_7], %16 {strides = array<i32>} : memref<8x128xf32, #tpu.memory_space<vmem>>, vector<1x128xf32>,
    %c1_8 = arith.constant 1 : index
    %c0_9 = arith.constant 0 : index
    %18 = vector.load %arg4[%c1_8, %c0_9] : memref<8x128xf32, #tpu.memory_space<vmem>>, vector<1x128xf32>
    tpu.vector_store %arg4[%c1_8, %c0_9], %12 {strides = array<i32>} : memref<8x128xf32, #tpu.memory_space<vmem>>, vector<1x128xf32>,
    %c2 = arith.constant 2 : index
    %c0_10 = arith.constant 0 : index
    %19 = vector.load %arg4[%c2, %c0_10] : memref<8x128xf32, #tpu.memory_space<vmem>>, vector<1x128xf32>
    tpu.vector_store %arg4[%c2, %c0_10], %14 {strides = array<i32>} : memref<8x128xf32, #tpu.memory_space<vmem>>, vector<1x128xf32>,
    %c3 = arith.constant 3 : index
    %c0_11 = arith.constant 0 : index
    %20 = vector.load %arg4[%c3, %c0_11] : memref<8x128xf32, #tpu.memory_space<vmem>>, vector<1x128xf32>
    tpu.vector_store %arg4[%c3, %c0_11], %13 {strides = array<i32>} : memref<8x128xf32, #tpu.memory_space<vmem>>, vector<1x128xf32>,
    %c4 = arith.constant 4 : index
    %c0_12 = arith.constant 0 : index
    %21 = vector.load %arg4[%c4, %c0_12] : memref<8x128xf32, #tpu.memory_space<vmem>>, vector<1x128xf32>
    tpu.vector_store %arg4[%c4, %c0_12], %15 {strides = array<i32>} : memref<8x128xf32, #tpu.memory_space<vmem>>, vector<1x128xf32>,
    %cst_13 = arith.constant 0.000000e+00 : f32
    %22 = vector.broadcast %cst_13 : f32 to vector<3x128xf32>
    %c5 = arith.constant 5 : index
    %c0_14 = arith.constant 0 : index
    %23 = vector.load %arg4[%c5, %c0_14] : memref<8x128xf32, #tpu.memory_space<vmem>>, vector<3x128xf32>
    tpu.vector_store %arg4[%c5, %c0_14], %22 {strides = array<i32>} : memref<8x128xf32, #tpu.memory_space<vmem>>, vector<3x128xf32>,
    %c0_15 = arith.constant 0 : index
    %c0_16 = arith.constant 0 : index
    %24 = vector.load %arg4[%c0_15, %c0_16] : memref<8x128xf32, #tpu.memory_space<vmem>>, vector<8x128xf32>
    %c0_17 = arith.constant 0 : index
    %c0_18 = arith.constant 0 : index
    %25 = vector.load %arg2[%c0_17, %c0_18] : memref<8x128xf32, #tpu.memory_space<vmem>>, vector<8x128xf32>
    %cst_19 = arith.constant dense<0.000000e+00> : vector<128x128xf32>
    %26 = tpu.matmul %24, %25, %cst_19 {dimension_numbers = #tpu.dot_dimension_numbers<[0], [0], [1], [1], [0, 1, 1, 1], [], []>} : vector<8x128xf32>, vector<8x128xf32>, vector<128x128xf32> -> vector<128x128xf32>
    %c0_20 = arith.constant 0 : index
    %c0_21 = arith.constant 0 : index
    %27 = vector.load %arg3[%c0_20, %c0_21] : memref<128x128xf32, #tpu.memory_space<vmem>>, vector<128x128xf32>
    tpu.vector_store %arg3[%c0_20, %c0_21], %26 {strides = array<i32>} : memref<128x128xf32, #tpu.memory_space<vmem>>, vector<128x128xf32>,
    return
  }
  func.func @transform_0(%arg0: i32) -> (i32, i32) {
    %c0_i32 = arith.constant 0 : i32
    %c0_i32_0 = arith.constant 0 : i32
    return %c0_i32, %arg0 : i32, i32
  }
  func.func @transform_1(%arg0: i32) -> (i32, i32) {
    %c0_i32 = arith.constant 0 : i32
    %c0_i32_0 = arith.constant 0 : i32
    %c0_i32_1 = arith.constant 0 : i32
    return %c0_i32, %c0_i32_0 : i32, i32
  }
  func.func @transform_2(%arg0: i32) -> (i32, i32) {
    %c0_i32 = arith.constant 0 : i32
    %c0_i32_0 = arith.constant 0 : i32
    return %arg0, %c0_i32 : i32, i32
  }
}

</mosaic_0001>

<llo_original>
// kernel: tpu_custom_call.1
$region0: #{tpu_custom_call.1}
  #allocation0 [shape = 'u32[]', space=smem, size = 0x4, offset = 0x4, fixed_abs, tag = 'smem constant byte address 0x4 - core index']
  #allocation1 [shape = 'u32[144,128]{1,0:T(1,128)}', space=vmem, size = 0x12000, scoped, tag = 'internal scratch']
  #allocation2 [shape = 'f32[8,128]{1,0:T(8,128)}', space=vmem, size = 0x1000, scoped, tag = 'scratch operand']
  %s0 = inlined_call_operand.hbm [shape: f32[2,128], index: 0, kind: input, shape index: {}]
  %s1 = inlined_call_operand.hbm [shape: f32[8,128], index: 1, kind: input, shape index: {}]
  %s2 = inlined_call_operand.hbm [shape: f32[128,128], index: 2, kind: output, shape index: {}]
  %s3 = sld [smem:[#allocation0]]
  $region26: #{tpu_custom_call.1} parent=0
    _
  %s5 = ssub.s32 1, %s3
  %s6 = scalar_select 0, %s5, %s3
  $region1: #{tpu_custom_call.1} parent=0
    #allocation3 [shape = 'u8[1024]{0}', space=vmem, size = 0x400, scoped, tag = 'input window, operand 0, single buffered']
    #allocation4 [shape = 's32[1]{0}', space=sflag, size = 0x4, scoped, tag = 'scoped memory for tpu_custom_call.1']
    #allocation5 [shape = 's32[1]{0}', space=sflag, size = 0x4, scoped, tag = 'scoped memory for tpu_custom_call.1']
    #allocation6 [shape = 'u8[4096]{0}', space=vmem, size = 0x1000, scoped, tag = 'input window, operand 1, single buffered']
    #allocation7 [shape = 's32[1]{0}', space=sflag, size = 0x4, scoped, tag = 'scoped memory for tpu_custom_call.1']
    #allocation8 [shape = 'u8[65536]{0}', space=vmem, size = 0x10000, scoped, tag = 'output window, operand 0, single buffered']
    %7 = vsyncpa [#allocation4], 0
    %8 = vsyncpa [#allocation7], 0
    %9 = vsyncpa [#allocation5], 0
    // Predicated region
    $region2: #{tpu_custom_call.1} parent=1 // pred_check
      _
    $region3: #{tpu_custom_call.1} parent=1 // pred_check_branch
      %11 = sbr.rel (0) target = $region5
    $region4: #{tpu_custom_call.1} parent=1 // pred_region
      %s13 = ssub.s32 32, 32
      %14 = vsyncadd [#allocation4], %s13
      %s16 = sshll.u32 [#allocation3], 4
      %s17 = int_to_ptr.vmem [resolvable:$true] %s16
      %19 = dma.hbm_to_vmem [thread:$0]  %s0, 32, %s17, [#allocation4]
    $region5: #{tpu_custom_call.1} parent=1 // pred_fallthru
      _
    // Predicated region
    $region6: #{tpu_custom_call.1} parent=1 // pred_check
      _
    $region7: #{tpu_custom_call.1} parent=1 // pred_check_branch
      %21 = sbr.rel (0) target = $region9
    $region8: #{tpu_custom_call.1} parent=1 // pred_region
      %s23 = ssub.s32 128, 128
      %24 = vsyncadd [#allocation7], %s23
      %s26 = sshll.u32 [#allocation6], 4
      %s27 = int_to_ptr.vmem [resolvable:$true] %s26
      %29 = dma.hbm_to_vmem [thread:$0]  %s1, 128, %s27, [#allocation7]
    $region9: #{tpu_custom_call.1} parent=1 // pred_fallthru
      _
    // Predicated region
    $region10: #{tpu_custom_call.1} parent=1 // pred_check
      _
    $region11: #{tpu_custom_call.1} parent=1 // pred_check_branch
      %31 = sbr.rel (0) target = $region13
    $region12: #{tpu_custom_call.1} parent=1 // pred_region
      %32 = dma.done [#allocation4], 32
    $region13: #{tpu_custom_call.1} parent=1 // pred_fallthru
      _
    // Predicated region
    $region14: #{tpu_custom_call.1} parent=1 // pred_check
      _
    $region15: #{tpu_custom_call.1} parent=1 // pred_check_branch
      %34 = sbr.rel (0) target = $region17
    $region16: #{tpu_custom_call.1} parent=1 // pred_region
      %35 = dma.done [#allocation7], 128
    $region17: #{tpu_custom_call.1} parent=1 // pred_fallthru
      _
    %v36 = vld [vmem:[#allocation3] sm:$0x1]
    %v37 = vld [vmem:[#allocation3 + $0x1] sm:$0x1]
    %v38 = vmul.f32 %v36, 1.7320508
    %v39 = vmul.f32 %v37, 0.0
    %v40 = vadd.f32 %v38, %v39
    %v41 = vmul.f32 %v36, 0.8660254
    %v42 = vmul.f32 %v37, 1.5
    %v43 = vadd.f32 %v41, %v42
    %v44 = vand.u32 2147483647, %v40
    %vm45 = vcmp.le.f32.partialorder %v44, 0.7853982
    %vm46 = vcmp.lt.s32.totalorder %v40, 0
    %v47 = vand.u32 %v40, 2139095040
    %v48 = vshrl.u32 %v47, 23
    %v49 = vsub.s32 %v48, 127
    %v50 = vand.u32 2147483647, %v40
    %v51 = vand.u32 %v50, 8388607
    %v52 = vor.u32 %v51, 8388608
    %v53 = vsub.s32 0, %v52
    %v54 = vadd.s32 %v49, 1
    %vm55 = vcmp.gt.s32.totalorder %v54, 0
    %v56 = vsel %vm55, %v54, 0
    %v57 = vshrl.u32 %v56, 5
    %v58 = vand.u32 %v56, 31
    %v59 = vsub.s32 32, %v58
    %v60 = vshrl.u32 683565275, %v59
    %v61 = vshll.u32 683565275, %v58
    %v62 = vshrl.u32 2475754826, %v59
    %v63 = vor.u32 %v61, %v62
    %v64 = vshll.u32 2475754826, %v58
    %v65 = vshrl.u32 2131351028, %v59
    %v66 = vor.u32 %v64, %v65
    %v67 = vshll.u32 2131351028, %v58
    %v68 = vshrl.u32 2102212464, %v59
    %v69 = vor.u32 %v67, %v68
    %v70 = vshll.u32 2102212464, %v58
    %v71 = vshrl.u32 920167782, %v59
    %v72 = vor.u32 %v70, %v71
    %v73 = vshll.u32 920167782, %v58
    %v74 = vshrl.u32 1326507024, %v59
    %v75 = vor.u32 %v73, %v74
    %vm76 = vcmp.lt.s32.totalorder %v57, 1
    %vm77 = vcmp.lt.s32.totalorder %v57, 2
    %vm78 = vcmp.lt.s32.totalorder %v57, 3
    %vm79 = vcmp.lt.s32.totalorder %v57, 4
    %v80 = vsel %vm76, %v60, %v63
    %v81 = vsel %vm79, %v69, 2102212464
    %v82 = vsel %vm78, %v66, %v81
    %v83 = vsel %vm77, %v80, %v82
    %v84 = vsel %vm76, %v63, %v66
    %v85 = vsel %vm79, %v72, 920167782
    %v86 = vsel %vm78, %v69, %v85
    %v87 = vsel %vm77, %v84, %v86
    %v88 = vsel %vm76, %v66, %v69
    %v89 = vsel %vm79, %v75, 1326507024
    %v90 = vsel %vm78, %v72, %v89
    %v91 = vsel %vm77, %v88, %v90
    %v92 = vshll.u32 %v52, 8
    %v93 = vmul.u32.u64.compose %v92, %v91
    %v94 = vextract.low.u32 %v93
    %v95 = vextract.high.u32 %v93
    %v96 = vmul.u32.u64.compose %v92, %v87
    %v97 = vextract.low.u32 %v96
    %v98 = vextract.high.u32 %v96
    %v99 = vmul.u32 %v92, %v83
    %v100 = vadd.s32 %v95, %v97
    %vm101 = vc.u32 %v95, %v97
    %v102 = vadd.s32 %v98, 1
    %v103 = vsel %vm101, %v102, %v98
    %v104 = vadd.s32 %v99, %v103
    %v105 = vadd.s32 %v104, 536870912
    %v106 = vshrl.u32 %v105, 30
    %v107 = vshll.u32 %v106, 30
    %v108 = vsub.s32 %v104, %v107
    %vm109 = vcmp.lt.s32.totalorder %v108, 0
    %v110 = vsub.s32 0, %v108
    %v111 = vsel %vm109, %v110, %v108
    %v112 = vclz %v111
    %v113 = vsub.s32 %v112, 2
    %vm114 = vcmp.gt.s32.totalorder 0, %v113
    %v115 = vsel %vm114, 0, %v113
    %v116 = vsub.s32 32, %v115
    %v117 = vshll.u32 %v108, %v115
    %v118 = vshrl.u32 %v100, %v116
    %v119 = vor.u32 %v117, %v118
    %v120 = vsub.s32 4294967266, %v115
    %v121 = vadd.s32 %v120, 127
    %v122 = vshll.u32 %v121, 23
    %v123 = vor.u32 4788187, %v122
    %v124 = vand.u32 2147483647, %v123
    %v126 = vcvt.s32.f32 %v119
    %v127 = vmul.f32 %v126, %v124
    %v128 = vxor.u32 %v127, 2147483648
    %v129 = vsel %vm46, %v128, %v127
    %v130 = vsub.s32 4, %v106
    %v131 = vsel %vm46, %v130, %v106
    %v132 = vsel %vm45, %v40, %v129
    %v133 = vsel %vm45, 0, %v131
    %v134 = vcosq.f32.pop %v132
    %v135 = vsinq.f32.pop %v132
    %vm136 = vweird.f32 %v40
    %v137 = vand.u32 %v133, 3
    %vm138 = vcmp.lt.s32.totalorder %v137, 2
    %vm139 = vcmp.eq.s32.totalorder %v137, 0
    %v140 = vxor.u32 %v135, 2147483648
    %v141 = vsel %vm139, %v134, %v140
    %vm142 = vcmp.eq.s32.totalorder %v137, 2
    %v143 = vxor.u32 %v134, 2147483648
    %v144 = vsel %vm142, %v143, %v135
    %v145 = vsel %vm138, %v141, %v144
    %v146 = vsel %vm136, nan, %v145
    %v147 = vand.u32 2147483647, %v40
    %vm148 = vcmp.le.f32.partialorder %v147, 0.7853982
    %vm149 = vcmp.lt.s32.totalorder %v40, 0
    %v150 = vand.u32 %v40, 2139095040
    %v151 = vshrl.u32 %v150, 23
    %v152 = vsub.s32 %v151, 127
    %v153 = vand.u32 2147483647, %v40
    %v154 = vand.u32 %v153, 8388607
    %v155 = vor.u32 %v154, 8388608
    %v156 = vsub.s32 0, %v155
    %v157 = vadd.s32 %v152, 1
    %vm158 = vcmp.gt.s32.totalorder %v157, 0
    %v159 = vsel %vm158, %v157, 0
    %v160 = vshrl.u32 %v159, 5
    %v161 = vand.u32 %v159, 31
    %v162 = vsub.s32 32, %v161
    %v163 = vshrl.u32 683565275, %v162
    %v164 = vshll.u32 683565275, %v161
    %v165 = vshrl.u32 2475754826, %v162
    %v166 = vor.u32 %v164, %v165
    %v167 = vshll.u32 2475754826, %v161
    %v168 = vshrl.u32 2131351028, %v162
    %v169 = vor.u32 %v167, %v168
    %v170 = vshll.u32 2131351028, %v161
    %v171 = vshrl.u32 2102212464, %v162
    %v172 = vor.u32 %v170, %v171
    %v173 = vshll.u32 2102212464, %v161
    %v174 = vshrl.u32 920167782, %v162
    %v175 = vor.u32 %v173, %v174
    %v176 = vshll.u32 920167782, %v161
    %v177 = vshrl.u32 1326507024, %v162
    %v178 = vor.u32 %v176, %v177
    %vm179 = vcmp.lt.s32.totalorder %v160, 1
    %vm180 = vcmp.lt.s32.totalorder %v160, 2
    %vm181 = vcmp.lt.s32.totalorder %v160, 3
    %vm182 = vcmp.lt.s32.totalorder %v160, 4
    %v183 = vsel %vm179, %v163, %v166
    %v184 = vsel %vm182, %v172, 2102212464
    %v185 = vsel %vm181, %v169, %v184
    %v186 = vsel %vm180, %v183, %v185
    %v187 = vsel %vm179, %v166, %v169
    %v188 = vsel %vm182, %v175, 920167782
    %v189 = vsel %vm181, %v172, %v188
    %v190 = vsel %vm180, %v187, %v189
    %v191 = vsel %vm179, %v169, %v172
    %v192 = vsel %vm182, %v178, 1326507024
    %v193 = vsel %vm181, %v175, %v192
    %v194 = vsel %vm180, %v191, %v193
    %v195 = vshll.u32 %v155, 8
    %v196 = vmul.u32.u64.compose %v195, %v194
    %v197 = vextract.low.u32 %v196
    %v198 = vextract.high.u32 %v196
    %v199 = vmul.u32.u64.compose %v195, %v190
    %v200 = vextract.low.u32 %v199
    %v201 = vextract.high.u32 %v199
    %v202 = vmul.u32 %v195, %v186
    %v203 = vadd.s32 %v198, %v200
    %vm204 = vc.u32 %v198, %v200
    %v205 = vadd.s32 %v201, 1
    %v206 = vsel %vm204, %v205, %v201
    %v207 = vadd.s32 %v202, %v206
    %v208 = vadd.s32 %v207, 536870912
    %v209 = vshrl.u32 %v208, 30
    %v210 = vshll.u32 %v209, 30
    %v211 = vsub.s32 %v207, %v210
    %vm212 = vcmp.lt.s32.totalorder %v211, 0
    %v213 = vsub.s32 0, %v211
    %v214 = vsel %vm212, %v213, %v211
    %v215 = vclz %v214
    %v216 = vsub.s32 %v215, 2
    %vm217 = vcmp.gt.s32.totalorder 0, %v216
    %v218 = vsel %vm217, 0, %v216
    %v219 = vsub.s32 32, %v218
    %v220 = vshll.u32 %v211, %v218
    %v221 = vshrl.u32 %v203, %v219
    %v222 = vor.u32 %v220, %v221
    %v223 = vsub.s32 4294967266, %v218
    %v224 = vadd.s32 %v223, 127
    %v225 = vshll.u32 %v224, 23
    %v226 = vor.u32 4788187, %v225
    %v227 = vand.u32 2147483647, %v226
    %v229 = vcvt.s32.f32 %v222
    %v230 = vmul.f32 %v229, %v227
    %v231 = vxor.u32 %v230, 2147483648
    %v232 = vsel %vm149, %v231, %v230
    %v233 = vsub.s32 4, %v209
    %v234 = vsel %vm149, %v233, %v209
    %v235 = vsel %vm148, %v40, %v232
    %v236 = vsel %vm148, 0, %v234
    %v237 = vcosq.f32.pop %v235
    %v238 = vsinq.f32.pop %v235
    %vm239 = vweird.f32 %v40
    %v240 = vadd.s32 %v236, 3
    %v241 = vand.u32 %v240, 3
    %vm242 = vcmp.lt.s32.totalorder %v241, 2
    %vm243 = vcmp.eq.s32.totalorder %v241, 0
    %v244 = vxor.u32 %v238, 2147483648
    %v245 = vsel %vm243, %v237, %v244
    %vm246 = vcmp.eq.s32.totalorder %v241, 2
    %v247 = vxor.u32 %v237, 2147483648
    %v248 = vsel %vm246, %v247, %v238
    %v249 = vsel %vm242, %v245, %v248
    %v250 = vsel %vm239, nan, %v249
    %v251 = vand.u32 2147483647, %v43
    %vm252 = vcmp.le.f32.partialorder %v251, 0.7853982
    %vm253 = vcmp.lt.s32.totalorder %v43, 0
    %v254 = vand.u32 %v43, 2139095040
    %v255 = vshrl.u32 %v254, 23
    %v256 = vsub.s32 %v255, 127
    %v257 = vand.u32 2147483647, %v43
    %v258 = vand.u32 %v257, 8388607
    %v259 = vor.u32 %v258, 8388608
    %v260 = vsub.s32 0, %v259
    %v261 = vadd.s32 %v256, 1
    %vm262 = vcmp.gt.s32.totalorder %v261, 0
    %v263 = vsel %vm262, %v261, 0
    %v264 = vshrl.u32 %v263, 5
    %v265 = vand.u32 %v263, 31
    %v266 = vsub.s32 32, %v265
    %v267 = vshrl.u32 683565275, %v266
    %v268 = vshll.u32 683565275, %v265
    %v269 = vshrl.u32 2475754826, %v266
    %v270 = vor.u32 %v268, %v269
    %v271 = vshll.u32 2475754826, %v265
    %v272 = vshrl.u32 2131351028, %v266
    %v273 = vor.u32 %v271, %v272
    %v274 = vshll.u32 2131351028, %v265
    %v275 = vshrl.u32 2102212464, %v266
    %v276 = vor.u32 %v274, %v275
    %v277 = vshll.u32 2102212464, %v265
    %v278 = vshrl.u32 920167782, %v266
    %v279 = vor.u32 %v277, %v278
    %v280 = vshll.u32 920167782, %v265
    %v281 = vshrl.u32 1326507024, %v266
    %v282 = vor.u32 %v280, %v281
    %vm283 = vcmp.lt.s32.totalorder %v264, 1
    %vm284 = vcmp.lt.s32.totalorder %v264, 2
    %vm285 = vcmp.lt.s32.totalorder %v264, 3
    %vm286 = vcmp.lt.s32.totalorder %v264, 4
    %v287 = vsel %vm283, %v267, %v270
    %v288 = vsel %vm286, %v276, 2102212464
    %v289 = vsel %vm285, %v273, %v288
    %v290 = vsel %vm284, %v287, %v289
    %v291 = vsel %vm283, %v270, %v273
    %v292 = vsel %vm286, %v279, 920167782
    %v293 = vsel %vm285, %v276, %v292
    %v294 = vsel %vm284, %v291, %v293
    %v295 = vsel %vm283, %v273, %v276
    %v296 = vsel %vm286, %v282, 1326507024
    %v297 = vsel %vm285, %v279, %v296
    %v298 = vsel %vm284, %v295, %v297
    %v299 = vshll.u32 %v259, 8
    %v300 = vmul.u32.u64.compose %v299, %v298
    %v301 = vextract.low.u32 %v300
    %v302 = vextract.high.u32 %v300
    %v303 = vmul.u32.u64.compose %v299, %v294
    %v304 = vextract.low.u32 %v303
    %v305 = vextract.high.u32 %v303
    %v306 = vmul.u32 %v299, %v290
    %v307 = vadd.s32 %v302, %v304
    %vm308 = vc.u32 %v302, %v304
    %v309 = vadd.s32 %v305, 1
    %v310 = vsel %vm308, %v309, %v305
    %v311 = vadd.s32 %v306, %v310
    %v312 = vadd.s32 %v311, 536870912
    %v313 = vshrl.u32 %v312, 30
    %v314 = vshll.u32 %v313, 30
    %v315 = vsub.s32 %v311, %v314
    %vm316 = vcmp.lt.s32.totalorder %v315, 0
    %v317 = vsub.s32 0, %v315
    %v318 = vsel %vm316, %v317, %v315
    %v319 = vclz %v318
    %v320 = vsub.s32 %v319, 2
    %vm321 = vcmp.gt.s32.totalorder 0, %v320
    %v322 = vsel %vm321, 0, %v320
    %v323 = vsub.s32 32, %v322
    %v324 = vshll.u32 %v315, %v322
    %v325 = vshrl.u32 %v307, %v323
    %v326 = vor.u32 %v324, %v325
    %v327 = vsub.s32 4294967266, %v322
    %v328 = vadd.s32 %v327, 127
    %v329 = vshll.u32 %v328, 23
    %v330 = vor.u32 4788187, %v329
    %v331 = vand.u32 2147483647, %v330
    %v333 = vcvt.s32.f32 %v326
    %v334 = vmul.f32 %v333, %v331
    %v335 = vxor.u32 %v334, 2147483648
    %v336 = vsel %vm253, %v335, %v334
    %v337 = vsub.s32 4, %v313
    %v338 = vsel %vm253, %v337, %v313
    %v339 = vsel %vm252, %v43, %v336
    %v340 = vsel %vm252, 0, %v338
    %v341 = vcosq.f32.pop %v339
    %v342 = vsinq.f32.pop %v339
    %vm343 = vweird.f32 %v43
    %v344 = vand.u32 %v340, 3
    %vm345 = vcmp.lt.s32.totalorder %v344, 2
    %vm346 = vcmp.eq.s32.totalorder %v344, 0
    %v347 = vxor.u32 %v342, 2147483648
    %v348 = vsel %vm346, %v341, %v347
    %vm349 = vcmp.eq.s32.totalorder %v344, 2
    %v350 = vxor.u32 %v341, 2147483648
    %v351 = vsel %vm349, %v350, %v342
    %v352 = vsel %vm345, %v348, %v351
    %v353 = vsel %vm343, nan, %v352
    %v354 = vand.u32 2147483647, %v43
    %vm355 = vcmp.le.f32.partialorder %v354, 0.7853982
    %vm356 = vcmp.lt.s32.totalorder %v43, 0
    %v357 = vand.u32 %v43, 2139095040
    %v358 = vshrl.u32 %v357, 23
    %v359 = vsub.s32 %v358, 127
    %v360 = vand.u32 2147483647, %v43
    %v361 = vand.u32 %v360, 8388607
    %v362 = vor.u32 %v361, 8388608
    %v363 = vsub.s32 0, %v362
    %v364 = vadd.s32 %v359, 1
    %vm365 = vcmp.gt.s32.totalorder %v364, 0
    %v366 = vsel %vm365, %v364, 0
    %v367 = vshrl.u32 %v366, 5
    %v368 = vand.u32 %v366, 31
    %v369 = vsub.s32 32, %v368
    %v370 = vshrl.u32 683565275, %v369
    %v371 = vshll.u32 683565275, %v368
    %v372 = vshrl.u32 2475754826, %v369
    %v373 = vor.u32 %v371, %v372
    %v374 = vshll.u32 2475754826, %v368
    %v375 = vshrl.u32 2131351028, %v369
    %v376 = vor.u32 %v374, %v375
    %v377 = vshll.u32 2131351028, %v368
    %v378 = vshrl.u32 2102212464, %v369
    %v379 = vor.u32 %v377, %v378
    %v380 = vshll.u32 2102212464, %v368
    %v381 = vshrl.u32 920167782, %v369
    %v382 = vor.u32 %v380, %v381
    %v383 = vshll.u32 920167782, %v368
    %v384 = vshrl.u32 1326507024, %v369
    %v385 = vor.u32 %v383, %v384
    %vm386 = vcmp.lt.s32.totalorder %v367, 1
    %vm387 = vcmp.lt.s32.totalorder %v367, 2
    %vm388 = vcmp.lt.s32.totalorder %v367, 3
    %vm389 = vcmp.lt.s32.totalorder %v367, 4
    %v390 = vsel %vm386, %v370, %v373
    %v391 = vsel %vm389, %v379, 2102212464
    %v392 = vsel %vm388, %v376, %v391
    %v393 = vsel %vm387, %v390, %v392
    %v394 = vsel %vm386, %v373, %v376
    %v395 = vsel %vm389, %v382, 920167782
    %v396 = vsel %vm388, %v379, %v395
    %v397 = vsel %vm387, %v394, %v396
    %v398 = vsel %vm386, %v376, %v379
    %v399 = vsel %vm389, %v385, 1326507024
    %v400 = vsel %vm388, %v382, %v399
    %v401 = vsel %vm387, %v398, %v400
    %v402 = vshll.u32 %v362, 8
    %v403 = vmul.u32.u64.compose %v402, %v401
    %v404 = vextract.low.u32 %v403
    %v405 = vextract.high.u32 %v403
    %v406 = vmul.u32.u64.compose %v402, %v397
    %v407 = vextract.low.u32 %v406
    %v408 = vextract.high.u32 %v406
    %v409 = vmul.u32 %v402, %v393
    %v410 = vadd.s32 %v405, %v407
    %vm411 = vc.u32 %v405, %v407
    %v412 = vadd.s32 %v408, 1
    %v413 = vsel %vm411, %v412, %v408
    %v414 = vadd.s32 %v409, %v413
    %v415 = vadd.s32 %v414, 536870912
    %v416 = vshrl.u32 %v415, 30
    %v417 = vshll.u32 %v416, 30
    %v418 = vsub.s32 %v414, %v417
    %vm419 = vcmp.lt.s32.totalorder %v418, 0
    %v420 = vsub.s32 0, %v418
    %v421 = vsel %vm419, %v420, %v418
    %v422 = vclz %v421
    %v423 = vsub.s32 %v422, 2
    %vm424 = vcmp.gt.s32.totalorder 0, %v423
    %v425 = vsel %vm424, 0, %v423
    %v426 = vsub.s32 32, %v425
    %v427 = vshll.u32 %v418, %v425
    %v428 = vshrl.u32 %v410, %v426
    %v429 = vor.u32 %v427, %v428
    %v430 = vsub.s32 4294967266, %v425
    %v431 = vadd.s32 %v430, 127
    %v432 = vshll.u32 %v431, 23
    %v433 = vor.u32 4788187, %v432
    %v434 = vand.u32 2147483647, %v433
    %v436 = vcvt.s32.f32 %v429
    %v437 = vmul.f32 %v436, %v434
    %v438 = vxor.u32 %v437, 2147483648
    %v439 = vsel %vm356, %v438, %v437
    %v440 = vsub.s32 4, %v416
    %v441 = vsel %vm356, %v440, %v416
    %v442 = vsel %vm355, %v43, %v439
    %v443 = vsel %vm355, 0, %v441
    %v444 = vcosq.f32.pop %v442
    %v445 = vsinq.f32.pop %v442
    %vm446 = vweird.f32 %v43
    %v447 = vadd.s32 %v443, 3
    %v448 = vand.u32 %v447, 3
    %vm449 = vcmp.lt.s32.totalorder %v448, 2
    %vm450 = vcmp.eq.s32.totalorder %v448, 0
    %v451 = vxor.u32 %v445, 2147483648
    %v452 = vsel %vm450, %v444, %v451
    %vm453 = vcmp.eq.s32.totalorder %v448, 2
    %v454 = vxor.u32 %v444, 2147483648
    %v455 = vsel %vm453, %v454, %v445
    %v456 = vsel %vm449, %v452, %v455
    %v457 = vsel %vm446, nan, %v456
    %458 = vst [vmem:[#allocation2] sm:$0x1] 1.0
    %459 = vst [vmem:[#allocation2 + $0x1] sm:$0x1] %v146
    %460 = vst [vmem:[#allocation2 + $0x2] sm:$0x1] %v353
    %461 = vst [vmem:[#allocation2 + $0x3] sm:$0x1] %v250
    %462 = vst [vmem:[#allocation2 + $0x4] sm:$0x1] %v457
    %463 = vst [vmem:[#allocation2 + $0x5] sm:$0x7] 0.0
    %v464 = vld [vmem:[#allocation2] sm:$0xff]
    %v465 = vld [vmem:[#allocation6] sm:$0xff]
    %466 = vxpose.xlu0.b32.start [1/16] %v464, 128
    %467 = vxpose.xlu0.b32.cont [2/16] 0.0, 128
    %468 = vxpose.xlu0.b32.cont [3/16] 0.0, 128
    %469 = vxpose.xlu0.b32.cont [4/16] 0.0, 128
    %470 = vxpose.xlu0.b32.cont [5/16] 0.0, 128
    %471 = vxpose.xlu0.b32.cont [6/16] 0.0, 128
    %472 = vxpose.xlu0.b32.cont [7/16] 0.0, 128
    %473 = vxpose.xlu0.b32.cont [8/16] 0.0, 128
    %474 = vxpose.xlu0.b32.cont [9/16] 0.0, 128
    %475 = vxpose.xlu0.b32.cont [10/16] 0.0, 128
    %476 = vxpose.xlu0.b32.cont [11/16] 0.0, 128
    %477 = vxpose.xlu0.b32.cont [12/16] 0.0, 128
    %478 = vxpose.xlu0.b32.cont [13/16] 0.0, 128
    %479 = vxpose.xlu0.b32.cont [14/16] 0.0, 128
    %480 = vxpose.xlu0.b32.cont [15/16] 0.0, 128
    %481 = vxpose.xlu0.b32.end [16/16] 0.0, 128
    %v482 = vpop.trf.xlu0
    %v483 = vpop.trf.xlu0
    %v484 = vpop.trf.xlu0
    %v485 = vpop.trf.xlu0
    %v486 = vpop.trf.xlu0
    %v487 = vpop.trf.xlu0
    %v488 = vpop.trf.xlu0
    %v489 = vpop.trf.xlu0
    %v490 = vpop.trf.xlu0
    %v491 = vpop.trf.xlu0
    %v492 = vpop.trf.xlu0
    %v493 = vpop.trf.xlu0
    %v494 = vpop.trf.xlu0
    %v495 = vpop.trf.xlu0
    %v496 = vpop.trf.xlu0
    %v497 = vpop.trf.xlu0
    %vm498 = vcmask 64512
    %v500 = vsel %vm498, %v482, 0
    %v503 = vsel %vm498, %v483, 0
    %v506 = vsel %vm498, %v484, 0
    %v509 = vsel %vm498, %v485, 0
    %v512 = vsel %vm498, %v486, 0
    %v515 = vsel %vm498, %v487, 0
    %v518 = vsel %vm498, %v488, 0
    %v521 = vsel %vm498, %v489, 0
    %v524 = vsel %vm498, %v490, 0
    %v527 = vsel %vm498, %v491, 0
    %v530 = vsel %vm498, %v492, 0
    %v533 = vsel %vm498, %v493, 0
    %v536 = vsel %vm498, %v494, 0
    %v539 = vsel %vm498, %v495, 0
    %v542 = vsel %vm498, %v496, 0
    %v545 = vsel %vm498, %v497, 0
    %547 = vmatprep.subr.mxu0 0.0
    %548 = vmatpush1.msra.mxu0 0.0
    %549 = vmatprep.subr.mxu0 0.0
    %550 = vmatpush1.msra.mxu0 0.0
    %551 = vmatprep.subr.mxu0 0.0
    %552 = vmatpush1.msra.mxu0 0.0
    %553 = vmatprep.subr.mxu0 0.0
    %554 = vmatpush1.msra.mxu0 0.0
    %555 = vmatprep.subr.mxu0 0.0
    %556 = vmatpush1.msra.mxu0 0.0
    %557 = vmatprep.subr.mxu0 0.0
    %558 = vmatpush1.msra.mxu0 0.0
    %559 = vmatprep.subr.mxu0 0.0
    %560 = vmatpush1.msra.mxu0 0.0
    %561 = vmatprep.subr.mxu0 0.0
    %562 = vmatpush1.msra.mxu0 0.0
    %563 = vmatprep.subr.mxu0 0.0
    %564 = vmatpush1.msra.mxu0 0.0
    %565 = vmatprep.subr.mxu0 0.0
    %566 = vmatpush1.msra.mxu0 0.0
    %567 = vmatprep.subr.mxu0 0.0
    %568 = vmatpush1.msra.mxu0 0.0
    %569 = vmatprep.subr.mxu0 0.0
    %570 = vmatpush1.msra.mxu0 0.0
    %571 = vmatprep.subr.mxu0 0.0
    %572 = vmatpush1.msra.mxu0 0.0
    %573 = vmatprep.subr.mxu0 0.0
    %574 = vmatpush1.msra.mxu0 0.0
    %575 = vmatprep.subr.mxu0 0.0
    %576 = vmatpush1.msra.mxu0 0.0
    %577 = vmatprep.subr.mxu0 0.0
    %578 = vmatpush1.msra.mxu0 %v465
    %579 = vmatprep.subr.mxu0 0.0
    %580 = vmatpush2.msra.mxu0 0.0
    %581 = vmatprep.subr.mxu0 0.0
    %582 = vmatpush2.msra.mxu0 0.0
    %583 = vmatprep.subr.mxu0 0.0
    %584 = vmatpush2.msra.mxu0 0.0
    %585 = vmatprep.subr.mxu0 0.0
    %586 = vmatpush2.msra.mxu0 0.0
    %587 = vmatprep.subr.mxu0 0.0
    %588 = vmatpush2.msra.mxu0 0.0
    %589 = vmatprep.subr.mxu0 0.0
    %590 = vmatpush2.msra.mxu0 0.0
    %591 = vmatprep.subr.mxu0 0.0
    %592 = vmatpush2.msra.mxu0 0.0
    %593 = vmatprep.subr.mxu0 0.0
    %594 = vmatpush2.msra.mxu0 0.0
    %595 = vmatprep.subr.mxu0 0.0
    %596 = vmatpush2.msra.mxu0 0.0
    %597 = vmatprep.subr.mxu0 0.0
    %598 = vmatpush2.msra.mxu0 0.0
    %599 = vmatprep.subr.mxu0 0.0
    %600 = vmatpush2.msra.mxu0 0.0
    %601 = vmatprep.subr.mxu0 0.0
    %602 = vmatpush2.msra.mxu0 0.0
    %603 = vmatprep.subr.mxu0 0.0
    %604 = vmatpush2.msra.mxu0 0.0
    %605 = vmatprep.subr.mxu0 0.0
    %606 = vmatpush2.msra.mxu0 0.0
    %607 = vmatprep.subr.mxu0 0.0
    %608 = vmatpush2.msra.mxu0 0.0
    %609 = vmatprep.subr.mxu0 0.0
    %610 = vmatpush2.msra.mxu0 0.0
    %611 = vmatprep.mubr.f32.mxu0 0.0
    %612 = vmatmul.mubr.f32.gmra.mxu0 %v500
    %v613 = vpop.f32.mrf.mxu0
    %v614 = vadd.f32 0.0, %v613
    %v615 = vpop.f32.mrf.mxu0
    %616 = vmatprep.mubr.f32.mxu0 0.0
    %617 = vmatmul.mubr.f32.gmra.mxu0 %v503
    %v618 = vpop.f32.mrf.mxu0
    %v619 = vadd.f32 0.0, %v618
    %v620 = vpop.f32.mrf.mxu0
    %621 = vmatprep.mubr.f32.mxu0 0.0
    %622 = vmatmul.mubr.f32.gmra.mxu0 %v506
    %v623 = vpop.f32.mrf.mxu0
    %v624 = vadd.f32 0.0, %v623
    %v625 = vpop.f32.mrf.mxu0
    %626 = vmatprep.mubr.f32.mxu0 0.0
    %627 = vmatmul.mubr.f32.gmra.mxu0 %v509
    %v628 = vpop.f32.mrf.mxu0
    %v629 = vadd.f32 0.0, %v628
    %v630 = vpop.f32.mrf.mxu0
    %631 = vmatprep.mubr.f32.mxu0 0.0
    %632 = vmatmul.mubr.f32.gmra.mxu0 %v512
    %v633 = vpop.f32.mrf.mxu0
    %v634 = vadd.f32 0.0, %v633
    %v635 = vpop.f32.mrf.mxu0
    %636 = vmatprep.mubr.f32.mxu0 0.0
    %637 = vmatmul.mubr.f32.gmra.mxu0 %v515
    %v638 = vpop.f32.mrf.mxu0
    %v639 = vadd.f32 0.0, %v638
    %v640 = vpop.f32.mrf.mxu0
    %641 = vmatprep.mubr.f32.mxu0 0.0
    %642 = vmatmul.mubr.f32.gmra.mxu0 %v518
    %v643 = vpop.f32.mrf.mxu0
    %v644 = vadd.f32 0.0, %v643
    %v645 = vpop.f32.mrf.mxu0
    %646 = vmatprep.mubr.f32.mxu0 0.0
    %647 = vmatmul.mubr.f32.gmra.mxu0 %v521
    %v648 = vpop.f32.mrf.mxu0
    %v649 = vadd.f32 0.0, %v648
    %v650 = vpop.f32.mrf.mxu0
    %651 = vmatprep.mubr.f32.mxu0 0.0
    %652 = vmatmul.mubr.f32.gmra.mxu0 %v524
    %v653 = vpop.f32.mrf.mxu0
    %v654 = vadd.f32 0.0, %v653
    %v655 = vpop.f32.mrf.mxu0
    %656 = vmatprep.mubr.f32.mxu0 0.0
    %657 = vmatmul.mubr.f32.gmra.mxu0 %v527
    %v658 = vpop.f32.mrf.mxu0
    %v659 = vadd.f32 0.0, %v658
    %v660 = vpop.f32.mrf.mxu0
    %661 = vmatprep.mubr.f32.mxu0 0.0
    %662 = vmatmul.mubr.f32.gmra.mxu0 %v530
    %v663 = vpop.f32.mrf.mxu0
    %v664 = vadd.f32 0.0, %v663
    %v665 = vpop.f32.mrf.mxu0
    %666 = vmatprep.mubr.f32.mxu0 0.0
    %667 = vmatmul.mubr.f32.gmra.mxu0 %v533
    %v668 = vpop.f32.mrf.mxu0
    %v669 = vadd.f32 0.0, %v668
    %v670 = vpop.f32.mrf.mxu0
    %671 = vmatprep.mubr.f32.mxu0 0.0
    %672 = vmatmul.mubr.f32.gmra.mxu0 %v536
    %v673 = vpop.f32.mrf.mxu0
    %v674 = vadd.f32 0.0, %v673
    %v675 = vpop.f32.mrf.mxu0
    %676 = vmatprep.mubr.f32.mxu0 0.0
    %677 = vmatmul.mubr.f32.gmra.mxu0 %v539
    %v678 = vpop.f32.mrf.mxu0
    %v679 = vadd.f32 0.0, %v678
    %v680 = vpop.f32.mrf.mxu0
    %681 = vmatprep.mubr.f32.mxu0 0.0
    %682 = vmatmul.mubr.f32.gmra.mxu0 %v542
    %v683 = vpop.f32.mrf.mxu0
    %v684 = vadd.f32 0.0, %v683
    %v685 = vpop.f32.mrf.mxu0
    %686 = vmatprep.mubr.f32.mxu0 0.0
    %687 = vmatmul.mubr.f32.gmra.mxu0 %v545
    %v688 = vpop.f32.mrf.mxu0
    %v689 = vadd.f32 0.0, %v688
    %v690 = vpop.f32.mrf.mxu0
    %691 = vdwg.mxu0
    %692 = vst [vmem:[#allocation8] sm:$0xff] %v614
    %693 = vst [vmem:[#allocation8 + $0x8] sm:$0xff] %v619
    %694 = vst [vmem:[#allocation8 + $0x10] sm:$0xff] %v624
    %695 = vst [vmem:[#allocation8 + $0x18] sm:$0xff] %v629
    %696 = vst [vmem:[#allocation8 + $0x20] sm:$0xff] %v634
    %697 = vst [vmem:[#allocation8 + $0x28] sm:$0xff] %v639
    %698 = vst [vmem:[#allocation8 + $0x30] sm:$0xff] %v644
    %699 = vst [vmem:[#allocation8 + $0x38] sm:$0xff] %v649
    %700 = vst [vmem:[#allocation8 + $0x40] sm:$0xff] %v654
    %701 = vst [vmem:[#allocation8 + $0x48] sm:$0xff] %v659
    %702 = vst [vmem:[#allocation8 + $0x50] sm:$0xff] %v664
    %703 = vst [vmem:[#allocation8 + $0x58] sm:$0xff] %v669
    %704 = vst [vmem:[#allocation8 + $0x60] sm:$0xff] %v674
    %705 = vst [vmem:[#allocation8 + $0x68] sm:$0xff] %v679
    %706 = vst [vmem:[#allocation8 + $0x70] sm:$0xff] %v684
    %707 = vst [vmem:[#allocation8 + $0x78] sm:$0xff] %v689
    // Predicated region
    $region18: #{tpu_custom_call.1} parent=1 // pred_check
      _
    $region19: #{tpu_custom_call.1} parent=1 // pred_check_branch
      %709 = sbr.rel (0) target = $region21
    $region20: #{tpu_custom_call.1} parent=1 // pred_region
      %s711 = ssub.s32 2048, 2048
      %712 = vsyncadd [#allocation5], %s711
      %s713 = sshll.u32 [#allocation8], 4
      %s714 = int_to_ptr.vmem [resolvable:$true] %s713
      %719 = dma.vmem_to_hbm [thread:$0]  %s714, 2048, %s2, [#allocation5], 128, 128, 8
    $region21: #{tpu_custom_call.1} parent=1 // pred_fallthru
      _
    // Predicated region
    $region22: #{tpu_custom_call.1} parent=1 // pred_check
      _
    $region23: #{tpu_custom_call.1} parent=1 // pred_check_branch
      %721 = sbr.rel (0) target = $region25
    $region24: #{tpu_custom_call.1} parent=1 // pred_region
      %722 = dma.done [#allocation5], 2048
    $region25: #{tpu_custom_call.1} parent=1 // pred_fallthru
      _
    %723 = vsyncpa [#allocation4], 1
    %724 = vsyncpa [#allocation7], 1
    %725 = vsyncpa [#allocation5], 1

</llo_original>
